<compile_context>
chip_gen: v7x
topology: tpu7x:2x2x1
jax: 0.10.0
libtpu: 0.0.40
codegen_flags: <defaults>
</compile_context>

<pallas_src>
import functools

import jax
import jax.numpy as jnp
from jax.experimental import pallas as pl
from jax.experimental.pallas import tpu as pltpu


def _cdiv(a: int, b: int) -> int:
    return -(-a // b)


def _round_up(x: int, m: int) -> int:
    return ((x + m - 1) // m) * m


def _accum_rows(tok_ref, acc_ref, n_rows: int):
    """acc_ref (tb,H) f32 += sum over the first `n_rows` S-rows of tok_ref (bf16).

    Chunked along the S (sublane) axis so no full-tile f32 temporary is ever
    live; at most ~9 partial reduces per tile, each chunk <= ~1/4 of the tile.
    """
    if n_rows <= 0:
        return
    chunk = max(16, _round_up(_cdiv(n_rows, 8), 16))
    n_full = n_rows // chunk
    rem = n_rows - n_full * chunk
    for c in range(n_full):  # static, <= 8 iterations
        acc_ref[...] += jnp.sum(tok_ref[:, pl.ds(c * chunk, chunk), :],
                                axis=1, dtype=jnp.float32)
    if rem > 0:
        acc_ref[...] += jnp.sum(tok_ref[:, pl.ds(n_full * chunk, rem), :],
                                axis=1, dtype=jnp.float32)


def _classifier_kernel(tok_ref, w_ref, b_ref, logits_ref, pooled_ref, acc_ref,
                       *, inv_s: float, rem_s: int):
    """Sum-pool one S-tile into the f32 accumulator; finalize on the last S-tile.

    tok_ref    : (TB, TS, H) bf16   streamed token-level encoder output tile
    w_ref      : (H, Lp)     f32    classifier weight  (grid-invariant, resident)
    b_ref      : (1, Lp)     f32    classifier bias    (grid-invariant, resident)
    logits_ref : (TB, Lp)    f32    output logits      (lane-dense)
    pooled_ref : (TB, H)     f32    pooled token_output
    acc_ref    : (TB, H)     f32    pooled-sum accumulator (VMEM scratch)
    """
    si = pl.program_id(1)
    last = pl.num_programs(1) - 1
    ts = tok_ref.shape[1]

    @pl.when(si == 0)
    def _():
        acc_ref[...] = jnp.zeros_like(acc_ref)

    if rem_s == ts:
        # S divides the tile evenly: every S-tile is fully valid.
        _accum_rows(tok_ref, acc_ref, ts)
    else:
        # Ragged last S-tile: sum only the valid rows (static slice); the
        # out-of-bounds sublanes of the partial block are never read.
        @pl.when(si != last)
        def _():
            _accum_rows(tok_ref, acc_ref, ts)

        @pl.when(si == last)
        def _():
            _accum_rows(tok_ref, acc_ref, rem_s)

    @pl.when(si == last)
    def _():
        pooled = acc_ref[...] * inv_s                    # one scale per B-tile
        pooled_ref[...] = pooled.astype(pooled_ref.dtype)
        logits = jnp.dot(pooled, w_ref[...], preferred_element_type=jnp.float32)
        logits_ref[...] = (logits + b_ref[...]).astype(logits_ref.dtype)


def classifier_forward(token_output, w, b, *, tb=128,
                       vmem_tile_budget=8 * 1024 * 1024,
                       vmem_limit_bytes=48 * 1024 * 1024):
    """token_output (B,S,H) bf16 -> (logits (B,L) f32, pooled token_output (B,H) f32)."""
    B, S, H = token_output.shape
    L = w.shape[1]
    Lp = _round_up(L, 128)

    # Consume the encoder's bf16 activations in place (no pad / cast pre-pass).
    tok = token_output if token_output.dtype == jnp.bfloat16 else token_output.astype(jnp.bfloat16)

    # W / bias stay f32 (tiny, resident); pad only the label axis to 128 lanes.
    w_p = w.astype(jnp.float32)
    b_p = b.astype(jnp.float32).reshape(1, L)
    if Lp != L:
        w_p = jnp.pad(w_p, ((0, 0), (0, Lp - L)))
        b_p = jnp.pad(b_p, ((0, 0), (0, Lp - L)))

    # B tile: large, to amortize per-grid-step overhead and the finalize matmul.
    tb = max(1, min(tb, B))

    # S tile: sized to the per-buffer VMEM budget, chosen to (nearly) divide S.
    bytes_per_s_row = tb * H * 2  # bf16
    ts_cap = max(16, (vmem_tile_budget // bytes_per_s_row) // 16 * 16)
    if S <= ts_cap:
        ts, grid_s = S, 1
    else:
        n_s = _cdiv(S, ts_cap)
        ts = _round_up(_cdiv(S, n_s), 16)
        grid_s = _cdiv(S, ts)
    rem_s = S - (grid_s - 1) * ts

    grid = (_cdiv(B, tb), grid_s)
    kernel = functools.partial(_classifier_kernel, inv_s=float(1.0 / S), rem_s=rem_s)

    cost = pl.CostEstimate(
        flops=B * S * H + 2 * B * H * Lp,
        transcendentals=0,
        bytes_accessed=B * S * H * 2 + H * Lp * 4 + Lp * 4 + B * (Lp + H) * 4,
    )

    logits_p, pooled = pl.pallas_call(
        kernel,
        out_shape=(
            jax.ShapeDtypeStruct((B, Lp), jnp.float32),
            jax.ShapeDtypeStruct((B, H), jnp.float32),
        ),
        grid_spec=pltpu.PrefetchScalarGridSpec(
            num_scalar_prefetch=0,
            grid=grid,
            in_specs=[
                pl.BlockSpec((tb, ts, H), lambda bi, si: (bi, si, 0)),  # streamed tokens
                pl.BlockSpec((H, Lp), lambda bi, si: (0, 0)),           # W resident
                pl.BlockSpec((1, Lp), lambda bi, si: (0, 0)),           # bias resident
            ],
            out_specs=(
                pl.BlockSpec((tb, Lp), lambda bi, si: (bi, 0)),
                pl.BlockSpec((tb, H), lambda bi, si: (bi, 0)),
            ),
            scratch_shapes=[pltpu.VMEM((tb, H), jnp.float32)],
        ),
        compiler_params=pltpu.CompilerParams(
            dimension_semantics=("parallel", "arbitrary"),
            vmem_limit_bytes=vmem_limit_bytes,
        ),
        cost_estimate=cost,
    )(tok, w_p, b_p)

    logits = logits_p[:, :L] if Lp != L else logits_p
    return logits, pooled


def model_forward(batch_tokens, params):
    """Mirror of MODEL.forward for dataflow_type == 'origin'.

    batch_tokens : (B, S) int32 token ids
    returns (logits, token_output) just like the PyTorch module.
    """
    # --- text encoder stand-in (plain JAX glue): bf16 embedding lookup -> (B, S, H)
    token_output = params["embedding"][batch_tokens]            # bf16, no cast pass
    # --- Classifier hot path in Pallas
    logits, pooled = classifier_forward(token_output, params["cls_w"], params["cls_b"])
    return logits, pooled


def init_params(key, vocab_size, hidden, num_labels):
    k1, k2, k3 = jax.random.split(key, 3)
    return {
        # Encoder output kept in bf16 so the kernel streams bf16 straight from HBM.
        "embedding": (jax.random.normal(k1, (vocab_size, hidden), jnp.float32) * 0.02
                      ).astype(jnp.bfloat16),
        "cls_w": jax.random.normal(k2, (hidden, num_labels), jnp.float32) * 0.02,
        "cls_b": jax.random.normal(k3, (num_labels,), jnp.float32) * 0.02,
    }


if __name__ == "__main__":
    # ---- Test 1: shapes consistent with the module's forward (single-tile path).
    B, S, H, L, V = 2, 8, 32, 16, 100

    key = jax.random.PRNGKey(0)
    k_tok, k_param = jax.random.split(key)
    params = init_params(k_param, V, H, L)
    batch_tokens = jax.random.randint(k_tok, (B, S), 0, V, dtype=jnp.int32)

    logits, token_output = jax.jit(model_forward)(batch_tokens, params)
    jax.block_until_ready((logits, token_output))

    # Pure-JAX reference (same bf16-activation / f32-accumulate precision path).
    tok_f32 = params["embedding"][batch_tokens].astype(jnp.float32)
    pooled_ref = tok_f32.sum(axis=1) * (1.0 / S)
    logits_ref = pooled_ref @ params["cls_w"] + params["cls_b"]

    assert logits.shape == (B, L) and token_output.shape == (B, H)
    assert jnp.allclose(token_output, pooled_ref, atol=1e-4, rtol=1e-3), "token_output mismatch"
    assert jnp.allclose(logits, logits_ref, atol=1e-3, rtol=1e-2), "logits mismatch"

    # ---- Test 2: exercise the tiled path (multiple S-tiles, ragged last S-tile,
    # partial last B-tile) by forcing a tiny per-buffer budget.
    B2, S2, H2, L2 = 10, 40, 32, 16
    k1, k2, k3 = jax.random.split(jax.random.PRNGKey(1), 3)
    tok2 = jax.random.normal(k1, (B2, S2, H2), jnp.float32).astype(jnp.bfloat16)
    w2 = jax.random.normal(k2, (H2, L2), jnp.float32) * 0.05
    b2 = jax.random.normal(k3, (L2,), jnp.float32) * 0.05

    run2 = jax.jit(lambda t, w, b: classifier_forward(t, w, b, tb=8, vmem_tile_budget=4096))
    logits2, pooled2 = run2(tok2, w2, b2)
    jax.block_until_ready((logits2, pooled2))

    tok2_f32 = tok2.astype(jnp.float32)
    pooled2_ref = tok2_f32.sum(axis=1) * (1.0 / S2)
    logits2_ref = pooled2_ref @ w2 + b2

    assert logits2.shape == (B2, L2) and pooled2.shape == (B2, H2)
    assert jnp.allclose(pooled2, pooled2_ref, atol=3e-3, rtol=1e-2), "tiled pooled mismatch"
    assert jnp.allclose(logits2, logits2_ref, atol=5e-3, rtol=1e-2), "tiled logits mismatch"

    print("KERNEL_OK")
</pallas_src>

<mosaic_0001>
module attributes {stable_mosaic.version = 11 : i64} {
  func.func @_classifier_kernel(%arg0: i32, %arg1: i32, %arg2: memref<2x8x32xbf16, #tpu.memory_space<vmem>>, %arg3: memref<32x128xf32, #tpu.memory_space<vmem>>, %arg4: memref<1x128xf32, #tpu.memory_space<vmem>>, %arg5: memref<2x128xf32, #tpu.memory_space<vmem>>, %arg6: memref<2x32xf32, #tpu.memory_space<vmem>>, %arg7: memref<2x32xf32, #tpu.memory_space<vmem>>) attributes {dimension_semantics = [#tpu.dimension_semantics<parallel>, #tpu.dimension_semantics<arbitrary>], iteration_bounds = array<i64: 1, 1>, scalar_prefetch = 0 : i64, scratch_operands = 1 : i64, tpu.core_type = #tpu.core_type<tc>, window_params = [{transform_indices = @transform_0, window_bounds = array<i64: 2, 8, 32>}, {pipeline_mode = #tpu.pipeline_mode<synchronous>, transform_indices = @transform_1, window_bounds = array<i64: 32, 128>}, {pipeline_mode = #tpu.pipeline_mode<synchronous>, transform_indices = @transform_2, window_bounds = array<i64: 1, 128>}, {transform_indices = @transform_3, window_bounds = array<i64: 2, 128>}, {transform_indices = @transform_4, window_bounds = array<i64: 2, 32>}]} {
    %c0_i32 = arith.constant 0 : i32
    %0 = arith.cmpi eq, %arg1, %c0_i32 : i32
    %1 = arith.extui %0 : i1 to i32
    %c0_i32_0 = arith.constant 0 : i32
    %2 = arith.cmpi ne, %1, %c0_i32_0 : i32
    scf.if %2 {
      %cst_9 = arith.constant 0.000000e+00 : f32
      %12 = vector.broadcast %cst_9 : f32 to vector<2x32xf32>
      %c0_10 = arith.constant 0 : index
      %c0_11 = arith.constant 0 : index
      %13 = vector.load %arg7[%c0_10, %c0_11] : memref<2x32xf32, #tpu.memory_space<vmem>>, vector<2x32xf32>
      tpu.vector_store %arg7[%c0_10, %c0_11], %12 {strides = array<i32>} : memref<2x32xf32, #tpu.memory_space<vmem>>, vector<2x32xf32>,
    } else {
    }
    %c0 = arith.constant 0 : index
    %c0_1 = arith.constant 0 : index
    %3 = vector.load %arg7[%c0, %c0_1] : memref<2x32xf32, #tpu.memory_space<vmem>>, vector<2x32xf32>
    %c0_2 = arith.constant 0 : index
    %c0_3 = arith.constant 0 : index
    %c0_4 = arith.constant 0 : index
    %4 = vector.load %arg2[%c0_2, %c0_3, %c0_4] : memref<2x8x32xbf16, #tpu.memory_space<vmem>>, vector<2x8x32xbf16>
    %5 = arith.extf %4 : vector<2x8x32xbf16> to vector<2x8x32xf32>
    %cst = arith.constant dense<0.000000e+00> : vector<2x32xf32>
    %6 = vector.multi_reduction <add>, %5, %cst [1] : vector<2x8x32xf32> to vector<2x32xf32>
    %7 = arith.addf %3, %6 : vector<2x32xf32>
    %c0_5 = arith.constant 0 : index
    %c0_6 = arith.constant 0 : index
    %8 = vector.load %arg7[%c0_5, %c0_6] : memref<2x32xf32, #tpu.memory_space<vmem>>, vector<2x32xf32>
    tpu.vector_store %arg7[%c0_5, %c0_6], %7 {strides = array<i32>} : memref<2x32xf32, #tpu.memory_space<vmem>>, vector<2x32xf32>,
    %c0_i32_7 = arith.constant 0 : i32
    %9 = arith.cmpi eq, %arg1, %c0_i32_7 : i32
    %10 = arith.extui %9 : i1 to i32
    %c0_i32_8 = arith.constant 0 : i32
    %11 = arith.cmpi ne, %10, %c0_i32_8 : i32
    scf.if %11 {
      %c0_9 = arith.constant 0 : index
      %c0_10 = arith.constant 0 : index
      %12 = vector.load %arg7[%c0_9, %c0_10] : memref<2x32xf32, #tpu.memory_space<vmem>>, vector<2x32xf32>
      %cst_11 = arith.constant 1.250000e-01 : f32
      %13 = vector.broadcast %cst_11 : f32 to vector<2x32xf32>
      %14 = arith.mulf %12, %13 : vector<2x32xf32>
      %c0_12 = arith.constant 0 : index
      %c0_13 = arith.constant 0 : index
      %15 = vector.load %arg6[%c0_12, %c0_13] : memref<2x32xf32, #tpu.memory_space<vmem>>, vector<2x32xf32>
      tpu.vector_store %arg6[%c0_12, %c0_13], %14 {strides = array<i32>} : memref<2x32xf32, #tpu.memory_space<vmem>>, vector<2x32xf32>,
      %c0_14 = arith.constant 0 : index
      %c0_15 = arith.constant 0 : index
      %16 = vector.load %arg3[%c0_14, %c0_15] : memref<32x128xf32, #tpu.memory_space<vmem>>, vector<32x128xf32>
      %cst_16 = arith.constant dense<0.000000e+00> : vector<2x128xf32>
      %17 = tpu.matmul %14, %16, %cst_16 {dimension_numbers = #tpu.dot_dimension_numbers<[1], [0], [0], [1], [0, 0, 1, 1], [], []>} : vector<2x32xf32>, vector<32x128xf32>, vector<2x128xf32> -> vector<2x128xf32>
      %c0_17 = arith.constant 0 : index
      %c0_18 = arith.constant 0 : index
      %18 = vector.load %arg4[%c0_17, %c0_18] : memref<1x128xf32, #tpu.memory_space<vmem>>, vector<1x128xf32>
      %19 = vector.broadcast %18 : vector<1x128xf32> to vector<2x128xf32>
      %20 = arith.addf %17, %19 : vector<2x128xf32>
      %c0_19 = arith.constant 0 : index
      %c0_20 = arith.constant 0 : index
      %21 = vector.load %arg5[%c0_19, %c0_20] : memref<2x128xf32, #tpu.memory_space<vmem>>, vector<2x128xf32>
      tpu.vector_store %arg5[%c0_19, %c0_20], %20 {strides = array<i32>} : memref<2x128xf32, #tpu.memory_space<vmem>>, vector<2x128xf32>,
    } else {
    }
    return
  }
  func.func @transform_0(%arg0: i32, %arg1: i32) -> (i32, i32, i32) {
    %c0_i32 = arith.constant 0 : i32
    %c0_i32_0 = arith.constant 0 : i32
    return %arg0, %arg1, %c0_i32 : i32, i32, i32
  }
  func.func @transform_1(%arg0: i32, %arg1: i32) -> (i32, i32) {
    %c0_i32 = arith.constant 0 : i32
    %c0_i32_0 = arith.constant 0 : i32
    %c0_i32_1 = arith.constant 0 : i32
    return %c0_i32, %c0_i32_0 : i32, i32
  }
  func.func @transform_2(%arg0: i32, %arg1: i32) -> (i32, i32) {
    %c0_i32 = arith.constant 0 : i32
    %c0_i32_0 = arith.constant 0 : i32
    %c0_i32_1 = arith.constant 0 : i32
    return %c0_i32, %c0_i32_0 : i32, i32
  }
  func.func @transform_3(%arg0: i32, %arg1: i32) -> (i32, i32) {
    %c0_i32 = arith.constant 0 : i32
    %c0_i32_0 = arith.constant 0 : i32
    return %arg0, %c0_i32 : i32, i32
  }
  func.func @transform_4(%arg0: i32, %arg1: i32) -> (i32, i32) {
    %c0_i32 = arith.constant 0 : i32
    %c0_i32_0 = arith.constant 0 : i32
    return %arg0, %c0_i32 : i32, i32
  }
}

</mosaic_0001>

<llo_original>
// kernel: model_forward.1
$region0: #{model_forward.1}
  #allocation0 [shape = 'u32[]', space=smem, size = 0x4, offset = 0x4, fixed_abs, tag = 'smem constant byte address 0x4 - core index']
  #allocation1 [shape = 'u32[144,128]{1,0:T(1,128)}', space=vmem, size = 0x12000, scoped, tag = 'internal scratch']
  #allocation2 [shape = 'f32[2,32]{1,0:T(2,128)}', space=vmem, size = 0x400, scoped, tag = 'scratch operand']
  %s0 = inlined_call_operand.vmem [shape: bf16[2,8,32], index: 0, kind: input, shape index: {}]
  %s1 = inlined_call_operand.vmem [shape: f32[32,128], index: 1, kind: input, shape index: {}]
  %s2 = inlined_call_operand.vmem [shape: f32[1,128], index: 2, kind: input, shape index: {}]
  %s3 = inlined_call_operand.hbm [shape: f32[2,128], index: 3, kind: output, shape index: {0}]
  %s4 = inlined_call_operand.hbm [shape: f32[2,32], index: 4, kind: output, shape index: {1}]
  %5 = xla_tuple %s3, %s4
  %s6 = sld [smem:[#allocation0]]
  $region38: #{model_forward.1} parent=0
    _
  %s8 = ssub.s32 1, %s6
  %s9 = scalar_select 0, %s8, %s6
  $region1: #{model_forward.1} parent=0
    #allocation3 [shape = 'u8[1024]{0}', space=vmem, size = 0x400, scoped, tag = 'output window, operand 0, single buffered']
    #allocation4 [shape = 's32[1]{0}', space=sflag, size = 0x4, scoped, tag = 'scoped memory for model_forward.1']
    #allocation5 [shape = 'u8[1024]{0}', space=vmem, size = 0x400, scoped, tag = 'output window, operand 1, single buffered']
    #allocation6 [shape = 's32[1]{0}', space=sflag, size = 0x4, scoped, tag = 'scoped memory for model_forward.1']
    %10 = vsyncpa [#allocation4], 0
    %11 = vsyncpa [#allocation6], 0
    // Predicated region
    $region2: #{model_forward.1} parent=1 // pred_check
      _
    $region3: #{model_forward.1} parent=1 // pred_check_branch
      %13 = sbr.rel (0) target = $region5
    $region4: #{model_forward.1} parent=1 // pred_region
      _
    $region5: #{model_forward.1} parent=1 // pred_fallthru
      _
    // Predicated region
    $region6: #{model_forward.1} parent=1 // pred_check
      _
    $region7: #{model_forward.1} parent=1 // pred_check_branch
      %15 = sbr.rel (0) target = $region9
    $region8: #{model_forward.1} parent=1 // pred_region
      _
    $region9: #{model_forward.1} parent=1 // pred_fallthru
      _
    // Predicated region
    $region10: #{model_forward.1} parent=1 // pred_check
      _
    $region11: #{model_forward.1} parent=1 // pred_check_branch
      %17 = sbr.rel (0) target = $region13
    $region12: #{model_forward.1} parent=1 // pred_region
      _
    $region13: #{model_forward.1} parent=1 // pred_fallthru
      _
    %p18 = scmp.eq.s32.totalorder 0, 0
    // Predicated region
    $region14: #{model_forward.1} parent=1 // pred_check
      %p19 = pneg %p18
    $region15: #{model_forward.1} parent=1 // pred_check_branch
      %21 = sbr.rel (%p19) target = $region17
    $region16: #{model_forward.1} parent=1 // pred_region
      %vm22 = vcmask 254976
      %23 = vst.msk [vmem:[#allocation2] sm:$0x3] %vm22, 0.0
    $region17: #{model_forward.1} parent=1 // pred_fallthru
      _
    %v24 = vld [vmem:[#allocation2] sm:$0x3]
    %v25 = vld [vmem:[%s0] sm:$0xf]
    %v26 = vld [vmem:[%s0 + $0x4] sm:$0xf]
    %v27 = vunpack.c.l.bf16 %v25
    %v28 = vunpack.c.l.bf16 %v26
    %vm29 = vcmask 261120
    %v30 = vsel %vm29, %v27, 0.0
    %v31 = vrot.slane %v30, 4
    %v32 = vadd.f32 %v30, %v31
    %v33 = vrot.slane %v32, 2
    %v34 = vadd.f32 %v32, %v33
    %v35 = vrot.slane %v34, 1
    %v36 = vadd.f32 %v34, %v35
    %v37 = vsel %vm29, %v28, 0.0
    %v38 = vrot.slane %v37, 4
    %v39 = vadd.f32 %v37, %v38
    %v40 = vrot.slane %v39, 2
    %v41 = vadd.f32 %v39, %v40
    %v42 = vrot.slane %v41, 1
    %v43 = vadd.f32 %v41, %v42
    %vm46 = vcmask 1041409
    %v47 = vsel %vm46, %v43, %v36
    %v49 = vadd.f32 %v24, %v47
    %vm50 = vcmask 254976
    %51 = vst.msk [vmem:[#allocation2] sm:$0x3] %vm50, %v49
    // Predicated region
    $region18: #{model_forward.1} parent=1 // pred_check
      %p52 = pneg %p18
    $region19: #{model_forward.1} parent=1 // pred_check_branch
      %54 = sbr.rel (%p52) target = $region21
    $region20: #{model_forward.1} parent=1 // pred_region
      %v55 = vld [vmem:[#allocation2] sm:$0x3]
      %v56 = vmul.f32 %v55, 0.125
      %57 = vst.msk [vmem:[#allocation5] sm:$0x3] %vm50, %v56
      %v58 = vld [vmem:[%s1] sm:$0xff]
      %v59 = vld [vmem:[%s1 + $0x8] sm:$0xff]
      %v60 = vld [vmem:[%s1 + $0x10] sm:$0xff]
      %v61 = vld [vmem:[%s1 + $0x18] sm:$0xff]
      %v62 = vld [vmem:[%s2] sm:$0x1]
      %v64 = vlaneseq
      %v65 = vshrl.u32 %v64, 7
      %v66 = vsub.s32 0, %v65
      %v67 = vrot.slane %v62, %v66
      %v70 = vsel %vm29, %v56, 0
      %72 = vmatprep.subr.mxu0 0.0
      %73 = vmatpush1.msra.mxu0 %v58
      %74 = vmatprep.subr.mxu0 0.0
      %75 = vmatpush1.msra.mxu0 %v59
      %76 = vmatprep.subr.mxu0 0.0
      %77 = vmatpush1.msra.mxu0 %v60
      %78 = vmatprep.subr.mxu0 0.0
      %79 = vmatpush1.msra.mxu0 %v61
      %80 = vmatprep.subr.mxu0 0.0
      %81 = vmatpush1.msra.mxu0 0.0
      %82 = vmatprep.subr.mxu0 0.0
      %83 = vmatpush1.msra.mxu0 0.0
      %84 = vmatprep.subr.mxu0 0.0
      %85 = vmatpush1.msra.mxu0 0.0
      %86 = vmatprep.subr.mxu0 0.0
      %87 = vmatpush1.msra.mxu0 0.0
      %88 = vmatprep.subr.mxu0 0.0
      %89 = vmatpush1.msra.mxu0 0.0
      %90 = vmatprep.subr.mxu0 0.0
      %91 = vmatpush1.msra.mxu0 0.0
      %92 = vmatprep.subr.mxu0 0.0
      %93 = vmatpush1.msra.mxu0 0.0
      %94 = vmatprep.subr.mxu0 0.0
      %95 = vmatpush1.msra.mxu0 0.0
      %96 = vmatprep.subr.mxu0 0.0
      %97 = vmatpush1.msra.mxu0 0.0
      %98 = vmatprep.subr.mxu0 0.0
      %99 = vmatpush1.msra.mxu0 0.0
      %100 = vmatprep.subr.mxu0 0.0
      %101 = vmatpush1.msra.mxu0 0.0
      %102 = vmatprep.subr.mxu0 0.0
      %103 = vmatpush1.msra.mxu0 0.0
      %104 = vmatprep.subr.mxu0 0.0
      %105 = vmatpush1.msra.mxu0 0.0
      %106 = vmatprep.subr.mxu0 0.0
      %107 = vmatpush1.msra.mxu0 0.0
      %108 = vmatprep.subr.mxu0 0.0
      %109 = vmatpush1.msra.mxu0 0.0
      %110 = vmatprep.subr.mxu0 0.0
      %111 = vmatpush1.msra.mxu0 0.0
      %112 = vmatprep.subr.mxu0 0.0
      %113 = vmatpush1.msra.mxu0 0.0
      %114 = vmatprep.subr.mxu0 0.0
      %115 = vmatpush1.msra.mxu0 0.0
      %116 = vmatprep.subr.mxu0 0.0
      %117 = vmatpush1.msra.mxu0 0.0
      %118 = vmatprep.subr.mxu0 0.0
      %119 = vmatpush1.msra.mxu0 0.0
      %120 = vmatprep.subr.mxu0 0.0
      %121 = vmatpush1.msra.mxu0 0.0
      %122 = vmatprep.subr.mxu0 0.0
      %123 = vmatpush1.msra.mxu0 0.0
      %124 = vmatprep.subr.mxu0 0.0
      %125 = vmatpush1.msra.mxu0 0.0
      %126 = vmatprep.subr.mxu0 0.0
      %127 = vmatpush1.msra.mxu0 0.0
      %128 = vmatprep.subr.mxu0 0.0
      %129 = vmatpush1.msra.mxu0 0.0
      %130 = vmatprep.subr.mxu0 0.0
      %131 = vmatpush1.msra.mxu0 0.0
      %132 = vmatprep.subr.mxu0 0.0
      %133 = vmatpush1.msra.mxu0 0.0
      %134 = vmatprep.subr.mxu0 0.0
      %135 = vmatpush1.msra.mxu0 0.0
      %136 = vmatprep.mubr.f32.mxu0 0.0
      %137 = vmatmul.mubr.f32.gmra.mrb[0].mxu0 %v70
      %v138 = vpop.f32.mrb[0].mxu0
      %v139 = vadd.f32 %v67, %v138
      %v140 = vpop.f32.mrb[0].mxu0
      %141 = vdwg.mxu0
      %142 = vst [vmem:[#allocation3] sm:$0x3] %v139
    $region21: #{model_forward.1} parent=1 // pred_fallthru
      _
    // Predicated region
    $region22: #{model_forward.1} parent=1 // pred_check
      _
    $region23: #{model_forward.1} parent=1 // pred_check_branch
      %144 = sbr.rel (0) target = $region25
    $region24: #{model_forward.1} parent=1 // pred_region
      %s146 = ssub.s32 32, 32
      %147 = vsyncadd [#allocation4], %s146
      %s149 = sshll.u32 [#allocation3], 4
      %s150 = int_to_ptr.vmem [resolvable:$true] %s149
      %152 = dma.vmem_to_hbm [thread:$0]  %s150, 32, %s3, [#allocation4]
    $region25: #{model_forward.1} parent=1 // pred_fallthru
      _
    // Predicated region
    $region26: #{model_forward.1} parent=1 // pred_check
      _
    $region27: #{model_forward.1} parent=1 // pred_check_branch
      %154 = sbr.rel (0) target = $region29
    $region28: #{model_forward.1} parent=1 // pred_region
      %s156 = ssub.s32 32, 32
      %157 = vsyncadd [#allocation6], %s156
      %s159 = sshll.u32 [#allocation5], 4
      %s160 = int_to_ptr.vmem [resolvable:$true] %s159
      %162 = dma.vmem_to_hbm [thread:$0]  %s160, 32, %s4, [#allocation6]
    $region29: #{model_forward.1} parent=1 // pred_fallthru
      _
    // Predicated region
    $region30: #{model_forward.1} parent=1 // pred_check
      _
    $region31: #{model_forward.1} parent=1 // pred_check_branch
      %164 = sbr.rel (0) target = $region33
    $region32: #{model_forward.1} parent=1 // pred_region
      %165 = dma.done [#allocation4], 32
    $region33: #{model_forward.1} parent=1 // pred_fallthru
      _
    // Predicated region
    $region34: #{model_forward.1} parent=1 // pred_check
      _
    $region35: #{model_forward.1} parent=1 // pred_check_branch
      %167 = sbr.rel (0) target = $region37
    $region36: #{model_forward.1} parent=1 // pred_region
      %168 = dma.done [#allocation6], 32
    $region37: #{model_forward.1} parent=1 // pred_fallthru
      _
    %169 = vsyncpa [#allocation4], 1
    %170 = vsyncpa [#allocation6], 1

</llo_original>
